<compile_context>
chip_gen: v5e
topology: v5e:2x2
jax: 0.10.0
libtpu: 0.0.40
codegen_flags: <defaults>
</compile_context>

<pallas_src>
import jax
import jax.numpy as jnp
from jax.experimental import pallas as pl
from jax.experimental.pallas import tpu as pltpu

_LANE = 128
_SUBLANE = 8


def _round_up(x, m):
    return ((x + m - 1) // m) * m


def net_kernel(x_ref, w1_ref, b1_ref, w2_ref, b2_ref, o_ref):
    # Fused MLP tile: matmul + bias + ReLU + matmul + bias, all in VMEM.
    x = x_ref[...]
    h = jnp.dot(x, w1_ref[...], preferred_element_type=jnp.float32) + b1_ref[...]
    h = jnp.maximum(h, 0.0)
    out = jnp.dot(h, w2_ref[...], preferred_element_type=jnp.float32) + b2_ref[...]
    o_ref[...] = out.astype(o_ref.dtype)


def prepare_params(w1, b1, w2, b2, compute_dtype=jnp.float32):
    """One-time param prep: pad hidden dim to a lane multiple, biases as rows.

    Zero padding is exact: relu(x @ 0 + 0) = 0 and the padded w2 rows are 0, so
    the logical 10 output columns are bit-identical in value.
    """
    F, H = w1.shape
    C = w2.shape[1]
    HP = _round_up(H, _LANE)
    w1p = jnp.zeros((F, HP), compute_dtype).at[:, :H].set(w1.astype(compute_dtype))
    b1p = jnp.zeros((1, HP), jnp.float32).at[0, :H].set(
        b1.reshape(-1).astype(jnp.float32))
    w2p = jnp.zeros((HP, C), compute_dtype).at[:H, :].set(w2.astype(compute_dtype))
    b2p = jnp.asarray(b2, jnp.float32).reshape(1, C)
    return w1p, b1p, w2p, b2p


def _vmem_budget_bytes():
    # Per-generation VMEM cap (v5e/v6e: 128 MiB, v7x: 64 MiB per TC) with headroom
    # for compiler scratch; also used to raise the scoped-VMEM limit explicitly.
    try:
        cap = pltpu.get_tpu_info().vmem_capacity_bytes
    except Exception:
        cap = 64 << 20  # conservative fallback (v7x per-TC)
    return int(cap) * 3 // 4


def _choose_block_b(B, F, C, x_itemsize, w_itemsize, block_b, vmem_budget, HP):
    cp = _round_up(C, _LANE)  # VMEM lane padding of the narrow output tile
    # Resident (constant index_map) weights, conservatively counted double-buffered.
    resident = 2 * w_itemsize * (
        _round_up(F, _SUBLANE) * HP   # w1p
        + _SUBLANE * HP               # b1p
        + HP * cp                     # w2p
        + _SUBLANE * cp)              # b2p
    # Per batch-row VMEM cost of the double-buffered streamed blocks (x in, out out).
    per_row = 2 * (F * x_itemsize + cp * 4)
    avail = max(vmem_budget - resident, _SUBLANE * per_row)
    tb_vmem = max(_SUBLANE, (avail // per_row) // _SUBLANE * _SUBLANE)
    tb_two = _round_up(pl.cdiv(B, 2), _SUBLANE)  # >=2 grid steps (v7x megacore)
    tb = min(block_b, tb_vmem, tb_two)
    return max(_SUBLANE, _round_up(tb, _SUBLANE))


def net_forward(x, params, *, block_b=2048):
    """x: [B, F]; params from prepare_params() -> [B, C]."""
    w1p, b1p, w2p, b2p = params
    B, F = x.shape
    HP, C = w2p.shape
    out_dtype = x.dtype

    # Match the weights' compute dtype (e.g. bf16 weights -> bf16 activations).
    if x.dtype != w1p.dtype:
        x = x.astype(w1p.dtype)

    # Tiny-batch guard: keep the batch block at least one sublane tall.
    pad_rows = 0
    if B < _SUBLANE:
        pad_rows = _SUBLANE - B
        x = jnp.concatenate([x, jnp.zeros((pad_rows, F), x.dtype)], axis=0)
    Bp = B + pad_rows

    vmem_budget = _vmem_budget_bytes()
    TB = _choose_block_b(Bp, F, C, x.dtype.itemsize, w1p.dtype.itemsize,
                         block_b, vmem_budget, HP)
    grid = (pl.cdiv(Bp, TB),)  # ragged last block -> masked boundary store

    out = pl.pallas_call(
        net_kernel,
        out_shape=jax.ShapeDtypeStruct((Bp, C), out_dtype),
        grid_spec=pltpu.PrefetchScalarGridSpec(
            num_scalar_prefetch=0,
            grid=grid,
            in_specs=[
                pl.BlockSpec((TB, F), lambda i: (i, 0)),   # activations: streamed
                pl.BlockSpec((F, HP), lambda i: (0, 0)),   # weights: VMEM-resident
                pl.BlockSpec((1, HP), lambda i: (0, 0)),
                pl.BlockSpec((HP, C), lambda i: (0, 0)),
                pl.BlockSpec((1, C), lambda i: (0, 0)),
            ],
            # Un-padded (TB, 10) output block: full-extent last dim, no wrapper slice.
            out_specs=pl.BlockSpec((TB, C), lambda i: (i, 0)),
        ),
        compiler_params=pltpu.CompilerParams(
            dimension_semantics=("parallel",),
            vmem_limit_bytes=vmem_budget,
        ),
    )(x, w1p, b1p, w2p, b2p)

    return out if pad_rows == 0 else out[:B]


def init_params(key, num_ftrs, hidden=50, num_classes=10):
    # Deterministic init mimicking nn.Linear's uniform(-1/sqrt(fan_in), 1/sqrt(fan_in)).
    k1, k2, k3, k4 = jax.random.split(key, 4)
    bound1 = 1.0 / jnp.sqrt(num_ftrs)
    bound2 = 1.0 / jnp.sqrt(hidden)
    w1 = jax.random.uniform(k1, (num_ftrs, hidden), jnp.float32, -bound1, bound1)
    b1 = jax.random.uniform(k2, (hidden,), jnp.float32, -bound1, bound1)
    w2 = jax.random.uniform(k3, (hidden, num_classes), jnp.float32, -bound2, bound2)
    b2 = jax.random.uniform(k4, (num_classes,), jnp.float32, -bound2, bound2)
    return w1, b1, w2, b2


if __name__ == "__main__":
    key = jax.random.PRNGKey(0)
    kx, kp = jax.random.split(key)

    # Small shapes; batch=50 exercises a multi-step grid (TB=32 via the
    # two-step rule) AND the ragged last block (rows 32..49 of a 32-row tile).
    batch, num_ftrs = 50, 32
    x = jax.random.normal(kx, (batch, num_ftrs), jnp.float32)
    w1, b1, w2, b2 = init_params(kp, num_ftrs)

    # One-time param prep (padding hoisted out of the per-call forward).
    params = prepare_params(w1, b1, w2, b2)

    out = net_forward(x, params)
    jax.block_until_ready(out)

    # Reference in plain JAX (dropout = identity in eval mode).
    ref = jnp.maximum(x @ w1 + b1[None, :], 0.0) @ w2 + b2[None, :]
    assert out.shape == (batch, 10)
    assert jnp.allclose(out, ref, atol=1e-5), "mismatch vs reference"

    print("KERNEL_OK")
</pallas_src>

<mosaic_0001>
module attributes {stable_mosaic.version = 11 : i64} {
  func.func @net_kernel(%arg0: i32, %arg1: memref<32x32xf32, #tpu.memory_space<vmem>>, %arg2: memref<32x128xf32, #tpu.memory_space<vmem>>, %arg3: memref<1x128xf32, #tpu.memory_space<vmem>>, %arg4: memref<128x10xf32, #tpu.memory_space<vmem>>, %arg5: memref<1x10xf32, #tpu.memory_space<vmem>>, %arg6: memref<32x10xf32, #tpu.memory_space<vmem>>) attributes {dimension_semantics = [#tpu.dimension_semantics<parallel>], iteration_bounds = array<i64: 2>, scalar_prefetch = 0 : i64, scratch_operands = 0 : i64, tpu.core_type = #tpu.core_type<tc>, window_params = [{transform_indices = @transform_0, window_bounds = array<i64: 32, 32>}, {pipeline_mode = #tpu.pipeline_mode<synchronous>, transform_indices = @transform_1, window_bounds = array<i64: 32, 128>}, {pipeline_mode = #tpu.pipeline_mode<synchronous>, transform_indices = @transform_2, window_bounds = array<i64: 1, 128>}, {pipeline_mode = #tpu.pipeline_mode<synchronous>, transform_indices = @transform_3, window_bounds = array<i64: 128, 10>}, {pipeline_mode = #tpu.pipeline_mode<synchronous>, transform_indices = @transform_4, window_bounds = array<i64: 1, 10>}, {transform_indices = @transform_5, window_bounds = array<i64: 32, 10>}]} {
    %c0 = arith.constant 0 : index
    %c0_0 = arith.constant 0 : index
    %0 = vector.load %arg1[%c0, %c0_0] : memref<32x32xf32, #tpu.memory_space<vmem>>, vector<32x32xf32>
    %c0_1 = arith.constant 0 : index
    %c0_2 = arith.constant 0 : index
    %1 = vector.load %arg2[%c0_1, %c0_2] : memref<32x128xf32, #tpu.memory_space<vmem>>, vector<32x128xf32>
    %cst = arith.constant dense<0.000000e+00> : vector<32x128xf32>
    %2 = tpu.matmul %0, %1, %cst {dimension_numbers = #tpu.dot_dimension_numbers<[1], [0], [0], [1], [0, 0, 1, 1], [], []>} : vector<32x32xf32>, vector<32x128xf32>, vector<32x128xf32> -> vector<32x128xf32>
    %c0_3 = arith.constant 0 : index
    %c0_4 = arith.constant 0 : index
    %3 = vector.load %arg3[%c0_3, %c0_4] : memref<1x128xf32, #tpu.memory_space<vmem>>, vector<1x128xf32>
    %4 = vector.broadcast %3 : vector<1x128xf32> to vector<32x128xf32>
    %5 = arith.addf %2, %4 : vector<32x128xf32>
    %cst_5 = arith.constant 0.000000e+00 : f32
    %6 = vector.broadcast %cst_5 : f32 to vector<32x128xf32>
    %7 = arith.maximumf %5, %6 : vector<32x128xf32>
    %c0_6 = arith.constant 0 : index
    %c0_7 = arith.constant 0 : index
    %8 = vector.load %arg4[%c0_6, %c0_7] : memref<128x10xf32, #tpu.memory_space<vmem>>, vector<128x10xf32>
    %cst_8 = arith.constant dense<0.000000e+00> : vector<32x10xf32>
    %9 = tpu.matmul %7, %8, %cst_8 {dimension_numbers = #tpu.dot_dimension_numbers<[1], [0], [0], [1], [0, 0, 1, 1], [], []>} : vector<32x128xf32>, vector<128x10xf32>, vector<32x10xf32> -> vector<32x10xf32>
    %c0_9 = arith.constant 0 : index
    %c0_10 = arith.constant 0 : index
    %10 = vector.load %arg5[%c0_9, %c0_10] : memref<1x10xf32, #tpu.memory_space<vmem>>, vector<1x10xf32>
    %11 = vector.broadcast %10 : vector<1x10xf32> to vector<32x10xf32>
    %12 = arith.addf %9, %11 : vector<32x10xf32>
    %c0_11 = arith.constant 0 : index
    %c0_12 = arith.constant 0 : index
    %13 = vector.load %arg6[%c0_11, %c0_12] : memref<32x10xf32, #tpu.memory_space<vmem>>, vector<32x10xf32>
    tpu.vector_store %arg6[%c0_11, %c0_12], %12 {strides = array<i32>} : memref<32x10xf32, #tpu.memory_space<vmem>>, vector<32x10xf32>,
    return
  }
  func.func @transform_0(%arg0: i32) -> (i32, i32) {
    %c0_i32 = arith.constant 0 : i32
    %c0_i32_0 = arith.constant 0 : i32
    return %arg0, %c0_i32 : i32, i32
  }
  func.func @transform_1(%arg0: i32) -> (i32, i32) {
    %c0_i32 = arith.constant 0 : i32
    %c0_i32_0 = arith.constant 0 : i32
    %c0_i32_1 = arith.constant 0 : i32
    return %c0_i32, %c0_i32_0 : i32, i32
  }
  func.func @transform_2(%arg0: i32) -> (i32, i32) {
    %c0_i32 = arith.constant 0 : i32
    %c0_i32_0 = arith.constant 0 : i32
    %c0_i32_1 = arith.constant 0 : i32
    return %c0_i32, %c0_i32_0 : i32, i32
  }
  func.func @transform_3(%arg0: i32) -> (i32, i32) {
    %c0_i32 = arith.constant 0 : i32
    %c0_i32_0 = arith.constant 0 : i32
    %c0_i32_1 = arith.constant 0 : i32
    return %c0_i32, %c0_i32_0 : i32, i32
  }
  func.func @transform_4(%arg0: i32) -> (i32, i32) {
    %c0_i32 = arith.constant 0 : i32
    %c0_i32_0 = arith.constant 0 : i32
    %c0_i32_1 = arith.constant 0 : i32
    return %c0_i32, %c0_i32_0 : i32, i32
  }
  func.func @transform_5(%arg0: i32) -> (i32, i32) {
    %c0_i32 = arith.constant 0 : i32
    %c0_i32_0 = arith.constant 0 : i32
    return %arg0, %c0_i32 : i32, i32
  }
}

</mosaic_0001>

<llo_original>
// kernel: tpu_custom_call.1
$region0: #{tpu_custom_call.1}
  #allocation0 [shape = 'u32[]', space=smem, size = 0x4, offset = 0x4, fixed_abs, tag = 'smem constant byte address 0x4 - core index']
  #allocation1 [shape = 'u32[72,128]{1,0:T(1,128)}', space=vmem, size = 0x9000, scoped, tag = 'internal scratch']
  %s0 = inlined_call_operand.vmem [shape: f32[50,32], index: 0, kind: input, shape index: {}]
  %s1 = inlined_call_operand.vmem [shape: f32[32,128], index: 1, kind: input, shape index: {}]
  %s2 = inlined_call_operand.vmem [shape: f32[1,128], index: 2, kind: input, shape index: {}]
  %s3 = inlined_call_operand.vmem [shape: f32[128,10], index: 3, kind: input, shape index: {}]
  %s4 = inlined_call_operand.vmem [shape: f32[1,10], index: 4, kind: input, shape index: {}]
  %s5 = inlined_call_operand.vmem [shape: f32[50,10], index: 5, kind: output, shape index: {}]
  %s6 = sld [smem:[#allocation0]]
  $region101: #{tpu_custom_call.1} parent=0
    _
  %s8 = ssub.s32 1, %s6
  %s9 = scalar_select 0, %s8, %s6
  $region1: #{tpu_custom_call.1} parent=0
    #allocation2 [shape = 'u8[32768]{0}', space=vmem, size = 0x8000, scoped, tag = 'output window, operand 0']
    loop: start=0, step=1, limit=4
    $region2: #{tpu_custom_call.1} parent=1 // loop_pre_header
      _
    $region3: #{tpu_custom_call.1} parent=1 // loop_header
      %s11 = sphi 0, %s15
      %p12 = scmp.ge.s32.totalorder %s11, 4
      %s21 = sphi 0, %s23
      %s24 = sphi 0, %s21
      %s25 = sphi 0, %s24
      %s41 = sphi 0, %s25
      %s45 = sphi 0, %s45
      %s47 = sphi 0, %s45
      %s48 = sphi 0, %s47
      %s62 = sphi 0, %s48
      %s66 = sphi 0, %s66
      %s68 = sphi 0, %s66
      %s69 = sphi 0, %s68
      %s83 = sphi 0, %s69
      %s87 = sphi 0, %s87
      %s89 = sphi 0, %s87
      %s90 = sphi 0, %s89
      %s104 = sphi 0, %s90
      %s108 = sphi 0, %s108
      %s110 = sphi 0, %s108
      %s111 = sphi 0, %s110
      %s125 = sphi 0, %s111
      %s131 = sphi 0, %s133
      %s134 = sphi 0, %s131
      %s135 = sphi 0, %s134
      %s151 = sphi 0, %s135
    $region4: #{tpu_custom_call.1} parent=1 // loop_header_branch
      %14 = sbr.rel (%p12) target = $region8
    $region5: #{tpu_custom_call.1} parent=1 // loop_body
      %s16 = ssub.s32 %s11, 1
      %s17 = ssub.s32 %s11, 2
      %s18 = sadd.s32 %s11, 1
      %s19 = ssub.s32 %s11, %s18
      %p20 = scmp.eq.s32.totalorder %s19, 0
      %s22 = sadd.s32 %s21, 1
      %s23 = scalar_select %p20, %s21, %s22
      %p26 = pneg %p20
      %p27 = scmp.eq.s32.totalorder %s11, 1
      %p28 = por %p26, %p27
      %p29 = scmp.ne.s32.totalorder %s21, %s24
      %p30 = scmp.eq.s32.totalorder %s11, 0
      %p31 = por %p29, %p30
      %p32 = scmp.ne.s32.totalorder %s21, %s24
      %p33 = scmp.eq.s32.totalorder %s16, 1
      %p34 = por %p32, %p33
      %p35 = scmp.ne.s32.totalorder %s24, %s25
      %p36 = scmp.eq.s32.totalorder %s16, 0
      %p37 = por %p35, %p36
      %p38 = scmp.ne.s32.totalorder %s24, %s25
      %p39 = scmp.eq.s32.totalorder %s17, 1
      %p40 = por %p38, %p39
      %p42 = scmp.ne.s32.totalorder %s25, %s41
      %p43 = scmp.eq.s32.totalorder %s17, 0
      %p44 = por %p42, %p43
      %s46 = sadd.s32 %s45, 1
      %p49 = scmp.eq.s32.totalorder %s11, 1
      %p50 = scmp.ne.s32.totalorder %s45, %s47
      %p51 = scmp.eq.s32.totalorder %s11, 0
      %p52 = por %p50, %p51
      %p53 = scmp.ne.s32.totalorder %s45, %s47
      %p54 = scmp.eq.s32.totalorder %s16, 1
      %p55 = por %p53, %p54
      %p56 = scmp.ne.s32.totalorder %s47, %s48
      %p57 = scmp.eq.s32.totalorder %s16, 0
      %p58 = por %p56, %p57
      %p59 = scmp.ne.s32.totalorder %s47, %s48
      %p60 = scmp.eq.s32.totalorder %s17, 1
      %p61 = por %p59, %p60
      %p63 = scmp.ne.s32.totalorder %s48, %s62
      %p64 = scmp.eq.s32.totalorder %s17, 0
      %p65 = por %p63, %p64
      %s67 = sadd.s32 %s66, 1
      %p70 = scmp.eq.s32.totalorder %s11, 1
      %p71 = scmp.ne.s32.totalorder %s66, %s68
      %p72 = scmp.eq.s32.totalorder %s11, 0
      %p73 = por %p71, %p72
      %p74 = scmp.ne.s32.totalorder %s66, %s68
      %p75 = scmp.eq.s32.totalorder %s16, 1
      %p76 = por %p74, %p75
      %p77 = scmp.ne.s32.totalorder %s68, %s69
      %p78 = scmp.eq.s32.totalorder %s16, 0
      %p79 = por %p77, %p78
      %p80 = scmp.ne.s32.totalorder %s68, %s69
      %p81 = scmp.eq.s32.totalorder %s17, 1
      %p82 = por %p80, %p81
      %p84 = scmp.ne.s32.totalorder %s69, %s83
      %p85 = scmp.eq.s32.totalorder %s17, 0
      %p86 = por %p84, %p85
      %s88 = sadd.s32 %s87, 1
      %p91 = scmp.eq.s32.totalorder %s11, 1
      %p92 = scmp.ne.s32.totalorder %s87, %s89
      %p93 = scmp.eq.s32.totalorder %s11, 0
      %p94 = por %p92, %p93
      %p95 = scmp.ne.s32.totalorder %s87, %s89
      %p96 = scmp.eq.s32.totalorder %s16, 1
      %p97 = por %p95, %p96
      %p98 = scmp.ne.s32.totalorder %s89, %s90
      %p99 = scmp.eq.s32.totalorder %s16, 0
      %p100 = por %p98, %p99
      %p101 = scmp.ne.s32.totalorder %s89, %s90
      %p102 = scmp.eq.s32.totalorder %s17, 1
      %p103 = por %p101, %p102
      %p105 = scmp.ne.s32.totalorder %s90, %s104
      %p106 = scmp.eq.s32.totalorder %s17, 0
      %p107 = por %p105, %p106
      %s109 = sadd.s32 %s108, 1
      %p112 = scmp.eq.s32.totalorder %s11, 1
      %p113 = scmp.ne.s32.totalorder %s108, %s110
      %p114 = scmp.eq.s32.totalorder %s11, 0
      %p115 = por %p113, %p114
      %p116 = scmp.ne.s32.totalorder %s108, %s110
      %p117 = scmp.eq.s32.totalorder %s16, 1
      %p118 = por %p116, %p117
      %p119 = scmp.ne.s32.totalorder %s110, %s111
      %p120 = scmp.eq.s32.totalorder %s16, 0
      %p121 = por %p119, %p120
      %p122 = scmp.ne.s32.totalorder %s110, %s111
      %p123 = scmp.eq.s32.totalorder %s17, 1
      %p124 = por %p122, %p123
      %p126 = scmp.ne.s32.totalorder %s111, %s125
      %p127 = scmp.eq.s32.totalorder %s17, 0
      %p128 = por %p126, %p127
      %s129 = ssub.s32 %s11, %s18
      %p130 = scmp.eq.s32.totalorder %s129, 0
      %s132 = sadd.s32 %s131, 1
      %s133 = scalar_select %p130, %s131, %s132
      %p136 = pneg %p130
      %p137 = scmp.eq.s32.totalorder %s11, 1
      %p138 = por %p136, %p137
      %p139 = scmp.ne.s32.totalorder %s131, %s134
      %p140 = scmp.eq.s32.totalorder %s11, 0
      %p141 = por %p139, %p140
      %p142 = scmp.ne.s32.totalorder %s131, %s134
      %p143 = scmp.eq.s32.totalorder %s16, 1
      %p144 = por %p142, %p143
      %p145 = scmp.ne.s32.totalorder %s134, %s135
      %p146 = scmp.eq.s32.totalorder %s16, 0
      %p147 = por %p145, %p146
      %p148 = scmp.ne.s32.totalorder %s134, %s135
      %p149 = scmp.eq.s32.totalorder %s17, 1
      %p150 = por %p148, %p149
      %p152 = scmp.ne.s32.totalorder %s135, %s151
      %p153 = scmp.eq.s32.totalorder %s17, 0
      %p154 = por %p152, %p153
      %p155 = scmp.le.s32.totalorder 1, %s11
      %p156 = scmp.lt.s32.totalorder %s11, 3
      %p157 = pnand %p155, %p156
      %p158 = pneg %p157
      // Predicated region
      $region9: #{tpu_custom_call.1} parent=5 // pred_check
        _
      $region10: #{tpu_custom_call.1} parent=5 // pred_check_branch
        %160 = sbr.rel (%p157) target = $region12
      $region11: #{tpu_custom_call.1} parent=5 // pred_region
        %s161 = ssub.s32 %s11, 1
        // Predicated region
        $region13: #{tpu_custom_call.1} parent=11 // pred_check
          %p162 = pneg %p58
        $region14: #{tpu_custom_call.1} parent=11 // pred_check_branch
          %164 = sbr.rel (%p162) target = $region16
        $region15: #{tpu_custom_call.1} parent=11 // pred_region
          _
        $region16: #{tpu_custom_call.1} parent=11 // pred_fallthru
          _
        // Predicated region
        $region17: #{tpu_custom_call.1} parent=11 // pred_check
          %p165 = pneg %p79
        $region18: #{tpu_custom_call.1} parent=11 // pred_check_branch
          %167 = sbr.rel (%p165) target = $region20
        $region19: #{tpu_custom_call.1} parent=11 // pred_region
          _
        $region20: #{tpu_custom_call.1} parent=11 // pred_fallthru
          _
        // Predicated region
        $region21: #{tpu_custom_call.1} parent=11 // pred_check
          %p168 = pneg %p100
        $region22: #{tpu_custom_call.1} parent=11 // pred_check_branch
          %170 = sbr.rel (%p168) target = $region24
        $region23: #{tpu_custom_call.1} parent=11 // pred_region
          _
        $region24: #{tpu_custom_call.1} parent=11 // pred_fallthru
          _
        // Predicated region
        $region25: #{tpu_custom_call.1} parent=11 // pred_check
          %p171 = pneg %p121
        $region26: #{tpu_custom_call.1} parent=11 // pred_check_branch
          %173 = sbr.rel (%p171) target = $region28
        $region27: #{tpu_custom_call.1} parent=11 // pred_region
          _
        $region28: #{tpu_custom_call.1} parent=11 // pred_fallthru
          _
      $region12: #{tpu_custom_call.1} parent=5 // pred_fallthru
        _
      %p174 = scmp.lt.s32.totalorder %s11, 2
      // Predicated region
      $region29: #{tpu_custom_call.1} parent=5 // pred_check
        %p175 = pneg %p174
      $region30: #{tpu_custom_call.1} parent=5 // pred_check_branch
        %177 = sbr.rel (%p175) target = $region32
      $region31: #{tpu_custom_call.1} parent=5 // pred_region
        // Predicated region
        $region33: #{tpu_custom_call.1} parent=31 // pred_check
          %p178 = pneg %p31
        $region34: #{tpu_custom_call.1} parent=31 // pred_check_branch
          %180 = sbr.rel (%p178) target = $region36
        $region35: #{tpu_custom_call.1} parent=31 // pred_region
          %s181 = smul.u32 4, %s11
          %s182 = ssub.s32 7, %s181
          %p183 = scmp.lt.s32.totalorder %s182, 4
          %s184 = scalar_select %p183, %s182, 4
          %s185 = smul.u32 8, %s184
          %p186 = scmp.lt.s32.totalorder %s181, 6
          %s187 = scalar_select %p186, %s181, 6
          %s188 = smul.addr %s187, 8
          %s189 = scalar_lea.vmem %s0, %s188
          %s190 = smul.u32 4, %s11
          %s191 = ssub.s32 7, %s190
          %p192 = scmp.lt.s32.totalorder %s191, 4
          %s193 = scalar_select %p192, %s191, 4
          %s194 = smul.u32 8, %s193
        $region36: #{tpu_custom_call.1} parent=31 // pred_fallthru
          _
      $region32: #{tpu_custom_call.1} parent=5 // pred_fallthru
        _
      %p195 = scmp.le.s32.totalorder 1, %s11
      %p196 = scmp.lt.s32.totalorder %s11, 3
      %p197 = pnand %p195, %p196
      %p198 = pneg %p197
      // Predicated region
      $region37: #{tpu_custom_call.1} parent=5 // pred_check
        _
      $region38: #{tpu_custom_call.1} parent=5 // pred_check_branch
        %200 = sbr.rel (%p197) target = $region40
      $region39: #{tpu_custom_call.1} parent=5 // pred_region
        %s201 = ssub.s32 %s11, 1
        %s202 = smul.u32 4, %s16
        %s203 = ssub.s32 7, %s202
        %p204 = scmp.lt.s32.totalorder %s203, 4
        %s205 = scalar_select %p204, %s203, 4
        %s206 = smul.u32 8, %s205
        %p207 = scmp.lt.s32.totalorder %s202, 6
        %s208 = scalar_select %p207, %s202, 6
        %s209 = smul.addr %s208, 8
        %s210 = scalar_lea.vmem %s0, %s209
        %p211 = pneg %p37
        %p212 = pneg %p34
        %p213 = pneg %p58
        %p214 = pneg %p55
        %p215 = pneg %p79
        %p216 = pneg %p76
        %p217 = pneg %p100
        %p218 = pneg %p97
        %p219 = pneg %p121
        %p220 = pneg %p118
        %p221 = pneg %p147
        %p222 = pneg %p144
        %s223 = sand.u32 %s134, 1
        %s224 = sand.u32 %s134, 1
        %s225 = smul.addr %s224, 32
        %s226 = scalar_lea.vmem [#allocation2], %s225
        %s227 = smul.u32 4, %s16
        %s228 = ssub.s32 7, %s227
        %p229 = scmp.lt.s32.totalorder %s228, 4
        %s230 = scalar_select %p229, %s228, 4
        %s231 = smul.u32 8, %s230
        %p232 = scmp.lt.s32.totalorder %s227, 6
        %s233 = scalar_select %p232, %s227, 6
        %s234 = smul.addr %s233, 8
        %s235 = scalar_lea.vmem %s0, %s234
        %s236 = smul.u32 4, %s16
        %s237 = ssub.s32 7, %s236
        %p238 = scmp.lt.s32.totalorder %s237, 4
        %s239 = scalar_select %p238, %s237, 4
        %s240 = smul.u32 8, %s239
        %s241 = smul.u32 4, %s16
        %s242 = ssub.s32 7, %s241
        %p243 = scmp.lt.s32.totalorder %s242, 4
        %s244 = scalar_select %p243, %s242, 4
        %s245 = smul.u32 8, %s244
        %v246 = vld [vmem:[%s235] sm:$0xff]
        %v247 = vld [vmem:[%s235 + $0x8] sm:$0xff]
        %v248 = vld [vmem:[%s235 + $0x10] sm:$0xff]
        %v249 = vld [vmem:[%s235 + $0x18] sm:$0xff]
        %v250 = vld [vmem:[%s1] sm:$0xff]
        %v251 = vld [vmem:[%s1 + $0x8] sm:$0xff]
        %v252 = vld [vmem:[%s1 + $0x10] sm:$0xff]
        %v253 = vld [vmem:[%s1 + $0x18] sm:$0xff]
        %v254 = vld [vmem:[%s2] sm:$0x1]
        %v256 = vperm.slane %v254, 0
        %vm258 = vcmask 261120
        %v260 = vsel %vm258, %v246, 0
        %v263 = vsel %vm258, %v247, 0
        %v266 = vsel %vm258, %v248, 0
        %v269 = vsel %vm258, %v249, 0
        %271 = vmatpush.msra.mxu0 0.0
        %272 = vmatpush.msra.mxu0 0.0
        %273 = vmatpush.msra.mxu0 0.0
        %274 = vmatpush.msra.mxu0 0.0
        %275 = vmatpush.msra.mxu0 0.0
        %276 = vmatpush.msra.mxu0 0.0
        %277 = vmatpush.msra.mxu0 0.0
        %278 = vmatpush.msra.mxu0 0.0
        %279 = vmatpush.msra.mxu0 0.0
        %280 = vmatpush.msra.mxu0 0.0
        %281 = vmatpush.msra.mxu0 0.0
        %282 = vmatpush.msra.mxu0 0.0
        %283 = vmatpush.msra.mxu0 %v253
        %284 = vmatpush.msra.mxu0 %v252
        %285 = vmatpush.msra.mxu0 %v251
        %286 = vmatpush.msra.mxu0 %v250
        %287 = vmatmul.f32.gmra.mxu0 %v260
        %v288 = vpop.f32.mrf.mxu0
        %v289 = vadd.f32 %v256, %v288
        %290 = vmatmul.f32.gmra.mxu0 %v263
        %v291 = vpop.f32.mrf.mxu0
        %v292 = vadd.f32 %v256, %v291
        %293 = vmatmul.f32.gmra.mxu0 %v266
        %v294 = vpop.f32.mrf.mxu0
        %v295 = vadd.f32 %v256, %v294
        %296 = vmatmul.f32.gmra.mxu0 %v269
        %v297 = vpop.f32.mrf.mxu0
        %v298 = vadd.f32 %v256, %v297
        %299 = vdwg.mxu0
        %v300 = vmax.f32 %v289, 0.0
        %v301 = vmax.f32 %v292, 0.0
        %v302 = vmax.f32 %v295, 0.0
        %v303 = vmax.f32 %v298, 0.0
        %v304 = vld [vmem:[%s3] sm:$0xff]
        %v305 = vld [vmem:[%s3 + $0x8] sm:$0xff]
        %v306 = vld [vmem:[%s3 + $0x10] sm:$0xff]
        %v307 = vld [vmem:[%s3 + $0x18] sm:$0xff]
        %v308 = vld [vmem:[%s3 + $0x20] sm:$0xff]
        %v309 = vld [vmem:[%s3 + $0x28] sm:$0xff]
        %v310 = vld [vmem:[%s3 + $0x30] sm:$0xff]
        %v311 = vld [vmem:[%s3 + $0x38] sm:$0xff]
        %v312 = vld [vmem:[%s3 + $0x40] sm:$0xff]
        %v313 = vld [vmem:[%s3 + $0x48] sm:$0xff]
        %v314 = vld [vmem:[%s3 + $0x50] sm:$0xff]
        %v315 = vld [vmem:[%s3 + $0x58] sm:$0xff]
        %v316 = vld [vmem:[%s3 + $0x60] sm:$0xff]
        %v317 = vld [vmem:[%s3 + $0x68] sm:$0xff]
        %v318 = vld [vmem:[%s3 + $0x70] sm:$0xff]
        %v319 = vld [vmem:[%s3 + $0x78] sm:$0xff]
        %v320 = vld [vmem:[%s4] sm:$0x1]
        %v322 = vperm.slane %v320, 0
        %324 = vmatpush.msra.mxu0 %v319
        %325 = vmatpush.msra.mxu0 %v318
        %326 = vmatpush.msra.mxu0 %v317
        %327 = vmatpush.msra.mxu0 %v316
        %328 = vmatpush.msra.mxu0 %v315
        %329 = vmatpush.msra.mxu0 %v314
        %330 = vmatpush.msra.mxu0 %v313
        %331 = vmatpush.msra.mxu0 %v312
        %332 = vmatpush.msra.mxu0 %v311
        %333 = vmatpush.msra.mxu0 %v310
        %334 = vmatpush.msra.mxu0 %v309
        %335 = vmatpush.msra.mxu0 %v308
        %336 = vmatpush.msra.mxu0 %v307
        %337 = vmatpush.msra.mxu0 %v306
        %338 = vmatpush.msra.mxu0 %v305
        %339 = vmatpush.msra.mxu0 %v304
        %340 = vmatmul.f32.gmra.mxu0 %v300
        %v341 = vpop.f32.mrf.mxu0
        %v342 = vadd.f32 %v322, %v341
        %343 = vmatmul.f32.gmra.mxu0 %v301
        %v344 = vpop.f32.mrf.mxu0
        %v345 = vadd.f32 %v322, %v344
        %346 = vmatmul.f32.gmra.mxu0 %v302
        %v347 = vpop.f32.mrf.mxu0
        %v348 = vadd.f32 %v322, %v347
        %349 = vmatmul.f32.gmra.mxu0 %v303
        %v350 = vpop.f32.mrf.mxu0
        %v351 = vadd.f32 %v322, %v350
        %352 = vdwg.mxu0
        %vm353 = vcmask 80896
        %354 = vst.msk [vmem:[%s226] sm:$0xff] %vm353, %v342
        %355 = vst.msk [vmem:[%s226 + $0x8] sm:$0xff] %vm353, %v345
        %356 = vst.msk [vmem:[%s226 + $0x10] sm:$0xff] %vm353, %v348
        %357 = vst.msk [vmem:[%s226 + $0x18] sm:$0xff] %vm353, %v351
        %s358 = sand.u32 %s134, 1
        %s359 = sand.u32 %s134, 1
        %s360 = smul.addr %s359, 32
        %s361 = scalar_lea.vmem [#allocation2], %s360
        // Predicated region
        $region41: #{tpu_custom_call.1} parent=39 // pred_check
          %p362 = pneg %p144
        $region42: #{tpu_custom_call.1} parent=39 // pred_check_branch
          %364 = sbr.rel (%p362) target = $region44
        $region43: #{tpu_custom_call.1} parent=39 // pred_region
          %s365 = smul.u32 4, %s16
          %s366 = ssub.s32 7, %s365
          %p367 = scmp.lt.s32.totalorder %s366, 4
          %s368 = scalar_select %p367, %s366, 4
          %s369 = smul.u32 8, %s368
          %p370 = scmp.ne.s32.totalorder 0, %s369
          %s371 = smul.addr %s365, 8
          %s372 = scalar_lea.vmem %s5, %s371
          // Predicated region
          $region45: #{tpu_custom_call.1} parent=43 // pred_check
            %p373 = pneg %p370
          $region46: #{tpu_custom_call.1} parent=43 // pred_check_branch
            %375 = sbr.rel (%p373) target = $region48
          $region47: #{tpu_custom_call.1} parent=43 // pred_region
            // Predicated region
            $region49: #{tpu_custom_call.1} parent=47 // pred_check
              _
            $region50: #{tpu_custom_call.1} parent=47 // pred_check_branch
              %377 = sbr.rel (0) target = $region52
            $region51: #{tpu_custom_call.1} parent=47 // pred_region
              // Predicated region
              $region71: #{tpu_custom_call.1} parent=51 // pred_check
                _
              $region72: #{tpu_custom_call.1} parent=51 // pred_check_branch
                %433 = sbr.rel (0) target = $region74
              $region73: #{tpu_custom_call.1} parent=51 // pred_region
                %s434 = sshrl.u32 %s368, 2
                // While loop
                $region75: #{tpu_custom_call.1} parent=73 // loop_pre_header
                  _
                $region76: #{tpu_custom_call.1} parent=73 // loop_header
                  %s436 = sphi 0, %s438
                  %p437 = scmp.ge.s32.totalorder %s436, %s434
                  %s441 = sphi 0, %s454
                  %s442 = sphi %s361, %s457
                  %s443 = sphi %s372, %s458
                $region77: #{tpu_custom_call.1} parent=73 // loop_header_branch
                  %440 = sbr.rel (%p437) target = $region81
                $region78: #{tpu_custom_call.1} parent=73 // loop_body
                  %v444 = vld [vmem:[%s442] sm:$0xff]
                  %445 = vst [vmem:[%s443] sm:$0xff] %v444
                  %v446 = vld [vmem:[%s442 + $0x8] sm:$0xff]
                  %447 = vst [vmem:[%s443 + $0x8] sm:$0xff] %v446
                  %v448 = vld [vmem:[%s442 + $0x10] sm:$0xff]
                  %449 = vst [vmem:[%s443 + $0x10] sm:$0xff] %v448
                  %v450 = vld [vmem:[%s442 + $0x18] sm:$0xff]
                  %451 = vst [vmem:[%s443 + $0x18] sm:$0xff] %v450
                  %s452 = sadd.s32 1, %s441
                  %p453 = scmp.ge.s32.totalorder %s452, %s434
                  %s454 = scalar_select %p453, 0, %s452
                  %s455 = smul.u32 %s454, 32
                  %s456 = smul.u32 %s454, 32
                  %s457 = scalar_lea.vmem %s361, %s455 [#allocation2]
                  %s458 = scalar_lea.vmem %s372, %s456
                $region79: #{tpu_custom_call.1} parent=73 // loop_footer
                  %s438 = sadd.s32 %s436, 1
                $region80: #{tpu_custom_call.1} parent=73 // loop_footer_branch
                  %435 = sbr.rel target = $region76
                $region81: #{tpu_custom_call.1} parent=73 // loop_exit
                  _
                %s459 = sshrl.u32 %s368, 2
                %s460 = sand.u32 %s368, 3
                %s461 = smul.u32 %s459, 4
                %s462 = smul.u32 8, %s461
                %s463 = scalar_lea.vmem %s361, %s462 [#allocation2]
                %s464 = smul.u32 8, %s461
                %s465 = scalar_lea.vmem %s372, %s464
                // While loop
                $region82: #{tpu_custom_call.1} parent=73 // loop_pre_header
                  _
                $region83: #{tpu_custom_call.1} parent=73 // loop_header
                  %s467 = sphi 0, %s469
                  %p468 = scmp.ge.s32.totalorder %s467, %s460
                  %s472 = sphi 0, %s479
                  %s473 = sphi %s463, %s482
                  %s474 = sphi %s465, %s483
                $region84: #{tpu_custom_call.1} parent=73 // loop_header_branch
                  %471 = sbr.rel (%p468) target = $region88
                $region85: #{tpu_custom_call.1} parent=73 // loop_body
                  %v475 = vld [vmem:[%s473] sm:$0xff]
                  %476 = vst [vmem:[%s474] sm:$0xff] %v475
                  %s477 = sadd.s32 1, %s472
                  %p478 = scmp.ge.s32.totalorder %s477, %s460
                  %s479 = scalar_select %p478, 0, %s477
                  %s480 = smul.u32 %s479, 8
                  %s481 = smul.u32 %s479, 8
                  %s482 = scalar_lea.vmem %s463, %s480 [#allocation2]
                  %s483 = scalar_lea.vmem %s465, %s481
                $region86: #{tpu_custom_call.1} parent=73 // loop_footer
                  %s469 = sadd.s32 %s467, 1
                $region87: #{tpu_custom_call.1} parent=73 // loop_footer_branch
                  %466 = sbr.rel target = $region83
                $region88: #{tpu_custom_call.1} parent=73 // loop_exit
                  _
              $region74: #{tpu_custom_call.1} parent=51 // pred_fallthru
                _
              // Predicated region
              $region89: #{tpu_custom_call.1} parent=51 // pred_check
                _
              $region90: #{tpu_custom_call.1} parent=51 // pred_check_branch
                %485 = sbr.rel target = $region92
              $region91: #{tpu_custom_call.1} parent=51 // pred_region
                _
              $region92: #{tpu_custom_call.1} parent=51 // pred_fallthru
                _
            $region52: #{tpu_custom_call.1} parent=47 // pred_fallthru
              _
            // Predicated region
            $region53: #{tpu_custom_call.1} parent=47 // pred_check
              _
            $region54: #{tpu_custom_call.1} parent=47 // pred_check_branch
              %379 = sbr.rel target = $region56
            $region55: #{tpu_custom_call.1} parent=47 // pred_region
              %s381 = ssub.s32 256, 1
              %s382 = sshrl.u32 %s368, 2
              // While loop
              $region57: #{tpu_custom_call.1} parent=55 // loop_pre_header
                _
              $region58: #{tpu_custom_call.1} parent=55 // loop_header
                %s384 = sphi 0, %s386
                %p385 = scmp.ge.s32.totalorder %s384, %s382
                %s389 = sphi 0, %s402
                %s390 = sphi %s361, %s405
                %s391 = sphi %s372, %s406
              $region59: #{tpu_custom_call.1} parent=55 // loop_header_branch
                %388 = sbr.rel (%p385) target = $region63
              $region60: #{tpu_custom_call.1} parent=55 // loop_body
                %v392 = vld [vmem:[%s390] sm:%s381]
                %393 = vst [vmem:[%s391] sm:%s381] %v392
                %v394 = vld [vmem:[%s390 + $0x8] sm:%s381]
                %395 = vst [vmem:[%s391 + $0x8] sm:%s381] %v394
                %v396 = vld [vmem:[%s390 + $0x10] sm:%s381]
                %397 = vst [vmem:[%s391 + $0x10] sm:%s381] %v396
                %v398 = vld [vmem:[%s390 + $0x18] sm:%s381]
                %399 = vst [vmem:[%s391 + $0x18] sm:%s381] %v398
                %s400 = sadd.s32 1, %s389
                %p401 = scmp.ge.s32.totalorder %s400, %s382
                %s402 = scalar_select %p401, 0, %s400
                %s403 = smul.u32 %s402, 32
                %s404 = smul.u32 %s402, 32
                %s405 = scalar_lea.vmem %s361, %s403 [#allocation2]
                %s406 = scalar_lea.vmem %s372, %s404
              $region61: #{tpu_custom_call.1} parent=55 // loop_footer
                %s386 = sadd.s32 %s384, 1
              $region62: #{tpu_custom_call.1} parent=55 // loop_footer_branch
                %383 = sbr.rel target = $region58
              $region63: #{tpu_custom_call.1} parent=55 // loop_exit
                _
              %s407 = sshrl.u32 %s368, 2
              %s408 = sand.u32 %s368, 3
              %s409 = smul.u32 %s407, 4
              %s410 = smul.u32 8, %s409
              %s411 = scalar_lea.vmem %s361, %s410 [#allocation2]
              %s412 = smul.u32 8, %s409
              %s413 = scalar_lea.vmem %s372, %s412
              // While loop
              $region64: #{tpu_custom_call.1} parent=55 // loop_pre_header
                _
              $region65: #{tpu_custom_call.1} parent=55 // loop_header
                %s415 = sphi 0, %s417
                %p416 = scmp.ge.s32.totalorder %s415, %s408
                %s420 = sphi 0, %s427
                %s421 = sphi %s411, %s430
                %s422 = sphi %s413, %s431
              $region66: #{tpu_custom_call.1} parent=55 // loop_header_branch
                %419 = sbr.rel (%p416) target = $region70
              $region67: #{tpu_custom_call.1} parent=55 // loop_body
                %v423 = vld [vmem:[%s421] sm:%s381]
                %424 = vst [vmem:[%s422] sm:%s381] %v423
                %s425 = sadd.s32 1, %s420
                %p426 = scmp.ge.s32.totalorder %s425, %s408
                %s427 = scalar_select %p426, 0, %s425
                %s428 = smul.u32 %s427, 8
                %s429 = smul.u32 %s427, 8
                %s430 = scalar_lea.vmem %s411, %s428 [#allocation2]
                %s431 = scalar_lea.vmem %s413, %s429
              $region68: #{tpu_custom_call.1} parent=55 // loop_footer
                %s417 = sadd.s32 %s415, 1
              $region69: #{tpu_custom_call.1} parent=55 // loop_footer_branch
                %414 = sbr.rel target = $region65
              $region70: #{tpu_custom_call.1} parent=55 // loop_exit
                _
            $region56: #{tpu_custom_call.1} parent=47 // pred_fallthru
              _
          $region48: #{tpu_custom_call.1} parent=43 // pred_fallthru
            _
          %486 = vnop
        $region44: #{tpu_custom_call.1} parent=39 // pred_fallthru
          _
      $region40: #{tpu_custom_call.1} parent=5 // pred_fallthru
        _
      %p487 = scmp.le.s32.totalorder 2, %s11
      // Predicated region
      $region93: #{tpu_custom_call.1} parent=5 // pred_check
        %p488 = pneg %p487
      $region94: #{tpu_custom_call.1} parent=5 // pred_check_branch
        %490 = sbr.rel (%p488) target = $region96
      $region95: #{tpu_custom_call.1} parent=5 // pred_region
        %s491 = ssub.s32 %s11, 2
        // Predicated region
        $region97: #{tpu_custom_call.1} parent=95 // pred_check
          %p492 = pneg %p150
        $region98: #{tpu_custom_call.1} parent=95 // pred_check_branch
          %494 = sbr.rel (%p492) target = $region100
        $region99: #{tpu_custom_call.1} parent=95 // pred_region
          %s495 = sand.u32 %s135, 1
          %s496 = sand.u32 %s135, 1
          %s497 = smul.addr %s496, 32
          %s498 = scalar_lea.vmem [#allocation2], %s497
        $region100: #{tpu_custom_call.1} parent=95 // pred_fallthru
          _
      $region96: #{tpu_custom_call.1} parent=5 // pred_fallthru
        _
    $region6: #{tpu_custom_call.1} parent=1 // loop_footer
      %s15 = sadd.s32 1, %s11
    $region7: #{tpu_custom_call.1} parent=1 // loop_footer_branch
      %10 = sbr.rel target = $region3
    $region8: #{tpu_custom_call.1} parent=1 // loop_exit
      _

</llo_original>
